<compile_context>
chip_gen: v7x
topology: tpu7x:2x2x1
jax: 0.10.0
libtpu: 0.0.40
codegen_flags: <defaults>
</compile_context>

<pallas_src>
import functools

import jax
import jax.numpy as jnp
from jax import lax
from jax.experimental import pallas as pl
from jax.experimental.pallas import tpu as pltpu


def _cdiv(a: int, b: int) -> int:
    return -(-a // b)


def _pad_tensor(x: jnp.ndarray, kernel_size, padding: str) -> jnp.ndarray:
    """Literal port of ConnectNet.pad_tensor: ConstantPad3d((0,0,ph,ph,pw,pw))
    on a (C,H,W) tensor pads W by 0, H by ph and C by pw (quirky, but faithful)."""
    if padding == "same":
        pad_h = (kernel_size[0] - 1) // 2
        pad_w = (kernel_size[1] - 1) // 2
        return jnp.pad(x, ((pad_w, pad_w), (pad_h, pad_h), (0, 0)))
    return x


def _conv_tile_kernel(xt_ref, k_ref, o_ref, xcol_ref, *, hf, wf, stride, c_in, wq, n):
    """One grid step = `ti` output rows for every output channel.

    xt_ref:   (1, s*s*C_in, Lq*Wq)  halo'd, stride-phase-decomposed row chunk.
    k_ref:    (C_out, K)            K = hf*wf*C_in weight matrix.
    o_ref:    (1, C_out, n)         n = ti*Wq lane-dense output slab.
    xcol_ref: (K, n)                tile-local im2col scratch (VMEM).
    """
    # Build the tile-local im2col matrix with hf*wf dense 2-D copies.  All
    # slice starts are static Python ints -> plain vector loads/stores.
    for di in range(hf):
        qi, ri = divmod(di, stride)
        for dj in range(wf):
            qj, rj = divmod(dj, stride)
            t = di * wf + dj
            ph = ri * stride + rj
            off = qi * wq + qj
            xcol_ref[pl.ds(t * c_in, c_in), :] = xt_ref[
                0, pl.ds(ph * c_in, c_in), pl.ds(off, n)
            ]
    # Single MXU matmul over the folded contraction dim, single dense store.
    o_ref[0] = jnp.dot(
        k_ref[...], xcol_ref[...], preferred_element_type=jnp.float32
    ).astype(o_ref.dtype)


@functools.partial(
    jax.jit,
    static_argnames=("kernel_size", "strides", "padding", "use_bf16", "activation"),
)
def connect_net_forward(
    x,
    kernels,
    *,
    kernel_size,
    strides=1,
    padding="valid",
    use_bf16=False,
    activation=None,
):
    """Forward pass of ConnectNet (activation defaults to None, as in the module)."""
    C_out, C_in, hf, wf = kernels.shape
    s = int(strides)

    x = _pad_tensor(x.astype(jnp.float32), kernel_size, padding)
    if x.shape[0] != C_in:
        # Faithful failure: the reference module's 'same' path with ks[1] > 1
        # pads the CHANNEL axis (ConstantPad3d arg order), so torch.mm would
        # also fail on shape mismatch.
        raise ValueError(
            "padding='same' with kernel_size[1] > 1 pads the channel axis in "
            "the reference module; the resulting channel mismatch cannot be "
            "convolved with `kernels`."
        )
    _, H_p, W_p = x.shape
    h_out = (H_p - hf) // s + 1
    w_out = (W_p - wf) // s + 1

    qi_max = (hf - 1) // s            # max row-phase quotient
    qj_max = (wf - 1) // s            # max col-phase quotient
    e = 1 if qj_max > 0 else 0        # one slack row so lane offsets never run OOB

    # Padded per-phase plane width; guarantees w_out + qj_max columns exist.
    Wq = max(_cdiv(W_p, s), w_out + qj_max)
    # Row tile: aim for >= ~512 output lanes per grid step, never more rows
    # than the output has.
    ti = max(1, min(h_out, _cdiv(512, Wq)))
    n_tiles = _cdiv(h_out, ti)
    Lq = ti + qi_max + e                              # rows per halo'd chunk
    Hq = max(_cdiv(H_p, s), n_tiles * ti + qi_max + e)
    n = ti * Wq                                       # output lanes per step
    K = hf * wf * C_in                                # folded contraction dim

    compute_dtype = jnp.bfloat16 if use_bf16 else jnp.float32

    # ---- O(|x|) wrapper rearrangement: zero pad + stride-phase decomposition.
    x_pad = jnp.pad(x, ((0, 0), (0, s * Hq - H_p), (0, s * Wq - W_p)))
    # xph[ri, rj, c, a, b] = x_pad[c, a*s + ri, b*s + rj]
    xph = x_pad.reshape(C_in, Hq, s, Wq, s).transpose(2, 4, 0, 1, 3)
    xph = xph.astype(compute_dtype)

    # ---- halo'd row chunks per grid tile so every in-kernel slice is static
    # and the pipeline streams only (ti + halo) rows per step.
    row_idx = (jnp.arange(n_tiles) * ti)[:, None] + jnp.arange(Lq)[None, :]
    xt = jnp.take(xph, row_idx, axis=3)               # (s,s,C_in,n_tiles,Lq,Wq)
    xt = xt.transpose(3, 0, 1, 2, 4, 5).reshape(n_tiles, s * s * C_in, Lq * Wq)

    # k_mat[o, (di*wf+dj)*C_in + c] = kernels[o, c, di, dj]
    k_mat = kernels.astype(compute_dtype).transpose(0, 2, 3, 1).reshape(C_out, K)

    isz = jnp.dtype(compute_dtype).itemsize
    step_bytes = (
        2 * s * s * C_in * Lq * Wq * isz    # streamed input chunk (double-buffered)
        + 2 * C_out * K * isz               # weights
        + 2 * C_out * n * 4                 # output slab (double-buffered)
        + K * n * isz                       # im2col scratch
    )
    try:
        vmem_cap = pltpu.get_tpu_info().vmem_capacity_bytes
    except Exception:  # pragma: no cover - conservative fallback
        vmem_cap = 128 * 2**20
    # ~96 MiB on v5e/v6e (128 MiB physical), ~48 MiB on v7x (64 MiB / TC).
    vmem_limit = int(min(max(4 * step_bytes, 32 * 2**20), (3 * vmem_cap) // 4))

    cost = pl.CostEstimate(
        flops=2 * n_tiles * n * C_out * K,
        transcendentals=0,
        bytes_accessed=xt.size * isz + k_mat.size * isz + n_tiles * C_out * n * 4,
    )

    kern = functools.partial(
        _conv_tile_kernel, hf=hf, wf=wf, stride=s, c_in=C_in, wq=Wq, n=n
    )

    out = pl.pallas_call(
        kern,
        out_shape=jax.ShapeDtypeStruct((n_tiles, C_out, n), jnp.float32),
        grid_spec=pltpu.PrefetchScalarGridSpec(
            num_scalar_prefetch=0,
            grid=(n_tiles,),
            in_specs=[
                pl.BlockSpec((1, s * s * C_in, Lq * Wq), lambda gi: (gi, 0, 0)),
                pl.BlockSpec((C_out, K), lambda gi: (0, 0)),
            ],
            out_specs=pl.BlockSpec((1, C_out, n), lambda gi: (gi, 0, 0)),
            scratch_shapes=[pltpu.VMEM((K, n), compute_dtype)],
        ),
        compiler_params=pltpu.CompilerParams(
            dimension_semantics=("parallel",),
            vmem_limit_bytes=vmem_limit,
        ),
        cost_estimate=cost,
    )(xt, k_mat)

    # Un-flatten the lane-dense output slabs and drop the padded rows/cols.
    out = out.transpose(1, 0, 2).reshape(C_out, n_tiles * ti, Wq)[:, :h_out, :w_out]
    return activation(out) if activation is not None else out


if __name__ == "__main__":
    key = jax.random.PRNGKey(0)
    kx, kk, kk2, kx2, kk3 = jax.random.split(key, 5)

    C_in, H, W = 4, 16, 16
    C_out, hf, wf = 8, 3, 3

    x = jax.random.normal(kx, (C_in, H, W), dtype=jnp.float32)
    kernels = jax.random.normal(kk, (C_out, C_in, hf, wf), dtype=jnp.float32)

    dn = ("NCHW", "OIHW", "NCHW")

    # 1) 'valid', stride 1 (module defaults).
    out = connect_net_forward(
        x, kernels, kernel_size=(hf, wf), strides=1, padding="valid"
    )
    out = jax.block_until_ready(out)
    ref = lax.conv_general_dilated(
        x[None], kernels, (1, 1), "VALID", dimension_numbers=dn
    )[0]
    assert out.shape == (C_out, H - hf + 1, W - wf + 1)
    assert jnp.allclose(out, ref, atol=1e-3, rtol=1e-3)

    # 2) 'valid', stride 2 (exercises the stride-phase decomposition).
    out_s2 = connect_net_forward(
        x, kernels, kernel_size=(hf, wf), strides=2, padding="valid"
    )
    ref_s2 = lax.conv_general_dilated(
        x[None], kernels, (2, 2), "VALID", dimension_numbers=dn
    )[0]
    assert out_s2.shape == ref_s2.shape
    assert jnp.allclose(out_s2, ref_s2, atol=1e-3, rtol=1e-3)

    # 3) 'same' with a (3,1) kernel (the module's quirky pad order makes this
    #    path well-defined: H padded by 1, W/C by 0).
    k31 = jax.random.normal(kk2, (C_out, C_in, 3, 1), dtype=jnp.float32)
    out_same = connect_net_forward(
        x, k31, kernel_size=(3, 1), strides=1, padding="same"
    )
    ref_same = lax.conv_general_dilated(
        x[None], k31, (1, 1), ((1, 1), (0, 0)), dimension_numbers=dn
    )[0]
    assert out_same.shape == (C_out, H, W)
    assert jnp.allclose(out_same, ref_same, atol=1e-3, rtol=1e-3)

    # 4) bf16 operands + f32 MXU accumulation, loose tolerance.
    out_bf16 = connect_net_forward(
        x, kernels, kernel_size=(hf, wf), strides=1, padding="valid", use_bf16=True
    )
    assert jnp.allclose(out_bf16, ref, atol=0.5, rtol=0.05)

    # 5) larger input -> multiple row tiles (n_tiles > 1, partial last tile).
    x_big = jax.random.normal(kx2, (8, 72, 72), dtype=jnp.float32)
    k_big = jax.random.normal(kk3, (16, 8, 3, 3), dtype=jnp.float32)
    out_big = connect_net_forward(
        x_big, k_big, kernel_size=(3, 3), strides=1, padding="valid"
    )
    ref_big = lax.conv_general_dilated(
        x_big[None], k_big, (1, 1), "VALID", dimension_numbers=dn
    )[0]
    assert out_big.shape == ref_big.shape
    assert jnp.allclose(out_big, ref_big, atol=2e-3, rtol=2e-3)

    jax.block_until_ready((out, out_s2, out_same, out_bf16, out_big))
    print("KERNEL_OK")
</pallas_src>

<mosaic_0001>
module attributes {stable_mosaic.version = 11 : i64} {
  func.func @_conv_tile_kernel(%arg0: i32, %arg1: memref<1x4x272xf32, #tpu.memory_space<vmem>>, %arg2: memref<8x36xf32, #tpu.memory_space<vmem>>, %arg3: memref<1x8x224xf32, #tpu.memory_space<vmem>>, %arg4: memref<36x224xf32, #tpu.memory_space<vmem>>) attributes {dimension_semantics = [#tpu.dimension_semantics<parallel>], iteration_bounds = array<i64: 1>, scalar_prefetch = 0 : i64, scratch_operands = 1 : i64, tpu.core_type = #tpu.core_type<tc>, window_params = [{transform_indices = @transform_0, window_bounds = array<i64: 1, 4, 272>}, {pipeline_mode = #tpu.pipeline_mode<synchronous>, transform_indices = @transform_1, window_bounds = array<i64: 8, 36>}, {transform_indices = @transform_2, window_bounds = array<i64: 1, 8, 224>}]} {
    %c0 = arith.constant 0 : index
    %c0_0 = arith.constant 0 : index
    %c0_1 = arith.constant 0 : index
    %0 = vector.load %arg1[%c0, %c0_0, %c0_1] : memref<1x4x272xf32, #tpu.memory_space<vmem>>, vector<1x4x224xf32>
    %1 = vector.shape_cast %0 : vector<1x4x224xf32> to vector<4x224xf32>
    %c0_2 = arith.constant 0 : index
    %c0_3 = arith.constant 0 : index
    %2 = vector.load %arg4[%c0_2, %c0_3] : memref<36x224xf32, #tpu.memory_space<vmem>>, vector<4x224xf32>
    tpu.vector_store %arg4[%c0_2, %c0_3], %1 {strides = array<i32>} : memref<36x224xf32, #tpu.memory_space<vmem>>, vector<4x224xf32>,
    %c0_4 = arith.constant 0 : index
    %c0_5 = arith.constant 0 : index
    %c1 = arith.constant 1 : index
    %3 = vector.load %arg1[%c0_4, %c0_5, %c1] : memref<1x4x272xf32, #tpu.memory_space<vmem>>, vector<1x4x224xf32>
    %4 = vector.shape_cast %3 : vector<1x4x224xf32> to vector<4x224xf32>
    %c4 = arith.constant 4 : index
    %c0_6 = arith.constant 0 : index
    %5 = vector.load %arg4[%c4, %c0_6] : memref<36x224xf32, #tpu.memory_space<vmem>>, vector<4x224xf32>
    tpu.vector_store %arg4[%c4, %c0_6], %4 {strides = array<i32>} : memref<36x224xf32, #tpu.memory_space<vmem>>, vector<4x224xf32>,
    %c0_7 = arith.constant 0 : index
    %c0_8 = arith.constant 0 : index
    %c2 = arith.constant 2 : index
    %6 = vector.load %arg1[%c0_7, %c0_8, %c2] : memref<1x4x272xf32, #tpu.memory_space<vmem>>, vector<1x4x224xf32>
    %7 = vector.shape_cast %6 : vector<1x4x224xf32> to vector<4x224xf32>
    %c8 = arith.constant 8 : index
    %c0_9 = arith.constant 0 : index
    %8 = vector.load %arg4[%c8, %c0_9] : memref<36x224xf32, #tpu.memory_space<vmem>>, vector<4x224xf32>
    tpu.vector_store %arg4[%c8, %c0_9], %7 {strides = array<i32>} : memref<36x224xf32, #tpu.memory_space<vmem>>, vector<4x224xf32>,
    %c0_10 = arith.constant 0 : index
    %c0_11 = arith.constant 0 : index
    %c16 = arith.constant 16 : index
    %9 = vector.load %arg1[%c0_10, %c0_11, %c16] : memref<1x4x272xf32, #tpu.memory_space<vmem>>, vector<1x4x224xf32>
    %10 = vector.shape_cast %9 : vector<1x4x224xf32> to vector<4x224xf32>
    %c12 = arith.constant 12 : index
    %c0_12 = arith.constant 0 : index
    %11 = vector.load %arg4[%c12, %c0_12] : memref<36x224xf32, #tpu.memory_space<vmem>>, vector<4x224xf32>
    tpu.vector_store %arg4[%c12, %c0_12], %10 {strides = array<i32>} : memref<36x224xf32, #tpu.memory_space<vmem>>, vector<4x224xf32>,
    %c0_13 = arith.constant 0 : index
    %c0_14 = arith.constant 0 : index
    %c17 = arith.constant 17 : index
    %12 = vector.load %arg1[%c0_13, %c0_14, %c17] : memref<1x4x272xf32, #tpu.memory_space<vmem>>, vector<1x4x224xf32>
    %13 = vector.shape_cast %12 : vector<1x4x224xf32> to vector<4x224xf32>
    %c16_15 = arith.constant 16 : index
    %c0_16 = arith.constant 0 : index
    %14 = vector.load %arg4[%c16_15, %c0_16] : memref<36x224xf32, #tpu.memory_space<vmem>>, vector<4x224xf32>
    tpu.vector_store %arg4[%c16_15, %c0_16], %13 {strides = array<i32>} : memref<36x224xf32, #tpu.memory_space<vmem>>, vector<4x224xf32>,
    %c0_17 = arith.constant 0 : index
    %c0_18 = arith.constant 0 : index
    %c18 = arith.constant 18 : index
    %15 = vector.load %arg1[%c0_17, %c0_18, %c18] : memref<1x4x272xf32, #tpu.memory_space<vmem>>, vector<1x4x224xf32>
    %16 = vector.shape_cast %15 : vector<1x4x224xf32> to vector<4x224xf32>
    %c20 = arith.constant 20 : index
    %c0_19 = arith.constant 0 : index
    %17 = vector.load %arg4[%c20, %c0_19] : memref<36x224xf32, #tpu.memory_space<vmem>>, vector<4x224xf32>
    tpu.vector_store %arg4[%c20, %c0_19], %16 {strides = array<i32>} : memref<36x224xf32, #tpu.memory_space<vmem>>, vector<4x224xf32>,
    %c0_20 = arith.constant 0 : index
    %c0_21 = arith.constant 0 : index
    %c32 = arith.constant 32 : index
    %18 = vector.load %arg1[%c0_20, %c0_21, %c32] : memref<1x4x272xf32, #tpu.memory_space<vmem>>, vector<1x4x224xf32>
    %19 = vector.shape_cast %18 : vector<1x4x224xf32> to vector<4x224xf32>
    %c24 = arith.constant 24 : index
    %c0_22 = arith.constant 0 : index
    %20 = vector.load %arg4[%c24, %c0_22] : memref<36x224xf32, #tpu.memory_space<vmem>>, vector<4x224xf32>
    tpu.vector_store %arg4[%c24, %c0_22], %19 {strides = array<i32>} : memref<36x224xf32, #tpu.memory_space<vmem>>, vector<4x224xf32>,
    %c0_23 = arith.constant 0 : index
    %c0_24 = arith.constant 0 : index
    %c33 = arith.constant 33 : index
    %21 = vector.load %arg1[%c0_23, %c0_24, %c33] : memref<1x4x272xf32, #tpu.memory_space<vmem>>, vector<1x4x224xf32>
    %22 = vector.shape_cast %21 : vector<1x4x224xf32> to vector<4x224xf32>
    %c28 = arith.constant 28 : index
    %c0_25 = arith.constant 0 : index
    %23 = vector.load %arg4[%c28, %c0_25] : memref<36x224xf32, #tpu.memory_space<vmem>>, vector<4x224xf32>
    tpu.vector_store %arg4[%c28, %c0_25], %22 {strides = array<i32>} : memref<36x224xf32, #tpu.memory_space<vmem>>, vector<4x224xf32>,
    %c0_26 = arith.constant 0 : index
    %c0_27 = arith.constant 0 : index
    %c34 = arith.constant 34 : index
    %24 = vector.load %arg1[%c0_26, %c0_27, %c34] : memref<1x4x272xf32, #tpu.memory_space<vmem>>, vector<1x4x224xf32>
    %25 = vector.shape_cast %24 : vector<1x4x224xf32> to vector<4x224xf32>
    %c32_28 = arith.constant 32 : index
    %c0_29 = arith.constant 0 : index
    %26 = vector.load %arg4[%c32_28, %c0_29] : memref<36x224xf32, #tpu.memory_space<vmem>>, vector<4x224xf32>
    tpu.vector_store %arg4[%c32_28, %c0_29], %25 {strides = array<i32>} : memref<36x224xf32, #tpu.memory_space<vmem>>, vector<4x224xf32>,
    %c0_30 = arith.constant 0 : index
    %c0_31 = arith.constant 0 : index
    %27 = vector.load %arg2[%c0_30, %c0_31] : memref<8x36xf32, #tpu.memory_space<vmem>>, vector<8x36xf32>
    %c0_32 = arith.constant 0 : index
    %c0_33 = arith.constant 0 : index
    %28 = vector.load %arg4[%c0_32, %c0_33] : memref<36x224xf32, #tpu.memory_space<vmem>>, vector<36x224xf32>
    %cst = arith.constant dense<0.000000e+00> : vector<8x224xf32>
    %29 = tpu.matmul %27, %28, %cst {dimension_numbers = #tpu.dot_dimension_numbers<[1], [0], [0], [1], [0, 0, 1, 1], [], []>} : vector<8x36xf32>, vector<36x224xf32>, vector<8x224xf32> -> vector<8x224xf32>
    %c0_34 = arith.constant 0 : index
    %c0_35 = arith.constant 0 : index
    %c0_36 = arith.constant 0 : index
    %30 = vector.load %arg3[%c0_34, %c0_35, %c0_36] : memref<1x8x224xf32, #tpu.memory_space<vmem>>, vector<1x8x224xf32>
    %31 = vector.shape_cast %30 : vector<1x8x224xf32> to vector<8x224xf32>
    %32 = vector.shape_cast %29 : vector<8x224xf32> to vector<1x8x224xf32>
    tpu.vector_store %arg3[%c0_34, %c0_35, %c0_36], %32 {strides = array<i32>} : memref<1x8x224xf32, #tpu.memory_space<vmem>>, vector<1x8x224xf32>,
    return
  }
  func.func @transform_0(%arg0: i32) -> (i32, i32, i32) {
    %c0_i32 = arith.constant 0 : i32
    %c0_i32_0 = arith.constant 0 : i32
    %c0_i32_1 = arith.constant 0 : i32
    return %arg0, %c0_i32, %c0_i32_0 : i32, i32, i32
  }
  func.func @transform_1(%arg0: i32) -> (i32, i32) {
    %c0_i32 = arith.constant 0 : i32
    %c0_i32_0 = arith.constant 0 : i32
    %c0_i32_1 = arith.constant 0 : i32
    return %c0_i32, %c0_i32_0 : i32, i32
  }
  func.func @transform_2(%arg0: i32) -> (i32, i32, i32) {
    %c0_i32 = arith.constant 0 : i32
    %c0_i32_0 = arith.constant 0 : i32
    %c0_i32_1 = arith.constant 0 : i32
    return %arg0, %c0_i32, %c0_i32_0 : i32, i32, i32
  }
}

</mosaic_0001>

<llo_original>
// kernel: connect_net_forward.1
$region0: #{connect_net_forward.1}
  #allocation0 [shape = 'u32[]', space=smem, size = 0x4, offset = 0x4, fixed_abs, tag = 'smem constant byte address 0x4 - core index']
  #allocation1 [shape = 'u32[144,128]{1,0:T(1,128)}', space=vmem, size = 0x12000, scoped, tag = 'internal scratch']
  #allocation2 [shape = 'f32[36,224]{1,0:T(8,128)}', space=vmem, size = 0xa000, scoped, tag = 'scratch operand']
  %s0 = inlined_call_operand.vmem [shape: f32[1,4,272], index: 0, kind: input, shape index: {}]
  %s1 = inlined_call_operand.vmem [shape: f32[8,36], index: 1, kind: input, shape index: {}]
  %s2 = inlined_call_operand.vmem [shape: f32[1,8,224], index: 2, kind: output, shape index: {}]
  %s3 = sld [smem:[#allocation0]]
  $region18: #{connect_net_forward.1} parent=0
    _
  %s5 = ssub.s32 1, %s3
  %s6 = scalar_select 0, %s5, %s3
  // Predicated region
  $region2: #{connect_net_forward.1} parent=0 // pred_check
    _
  $region3: #{connect_net_forward.1} parent=0 // pred_check_branch
    %8 = sbr.rel (0) target = $region5
  $region4: #{connect_net_forward.1} parent=0 // pred_region
    _
  $region5: #{connect_net_forward.1} parent=0 // pred_fallthru
    _
  // Predicated region
  $region6: #{connect_net_forward.1} parent=0 // pred_check
    _
  $region7: #{connect_net_forward.1} parent=0 // pred_check_branch
    %10 = sbr.rel (0) target = $region9
  $region8: #{connect_net_forward.1} parent=0 // pred_region
    _
  $region9: #{connect_net_forward.1} parent=0 // pred_fallthru
    _
  %v11 = vld [vmem:[%s0] sm:$0xff]
  %v13 = vcombine.high %v11, %v11
  %15 = vst [vmem:[#allocation2] sm:$0xf] %v11
  %vm16 = vcmask 781312
  %17 = vst.msk [vmem:[#allocation2 + $0x8] sm:$0xf] %vm16, %v13
  %v18 = vld [vmem:[%s0] sm:$0xff]
  %v20 = vcombine.low %v18, %v18
  %21 = vrot.lane.b32.xlu0 %v20, 127
  %v22 = vpop.permute.xlu0 %21
  %23 = vrot.lane.b32.xlu0 %v18, 127
  %v24 = vpop.permute.xlu0 %23
  %vm25 = vcmask 1039360
  %v26 = vsel %vm25, %v22, %v24
  %29 = vst [vmem:[#allocation2] sm:$0xf0] %v26
  %vm30 = vcmask 785412
  %31 = vst.msk [vmem:[#allocation2 + $0x8] sm:$0xf0] %vm30, %v24
  %v32 = vld [vmem:[%s0] sm:$0xff]
  %v34 = vcombine.high %v32, %v32
  %35 = vrot.lane.b32.xlu0 %v32, 126
  %v36 = vpop.permute.xlu0 %35
  %37 = vrot.lane.b32.xlu0 %v34, 126
  %v38 = vpop.permute.xlu0 %37
  %vm39 = vcmask 1031168
  %v40 = vsel %vm39, %v36, %v38
  %43 = vst [vmem:[#allocation2 + $0x10] sm:$0xf] %v40
  %44 = vst.msk [vmem:[#allocation2 + $0x18] sm:$0xf] %vm16, %v38
  %v45 = vld [vmem:[%s0] sm:$0xff]
  %v47 = vcombine.low %v45, %v45
  %48 = vrot.lane.b32.xlu0 %v47, 112
  %v49 = vpop.permute.xlu0 %48
  %50 = vrot.lane.b32.xlu0 %v45, 112
  %v51 = vpop.permute.xlu0 %50
  %vm52 = vcmask 916480
  %v53 = vsel %vm52, %v49, %v51
  %56 = vst [vmem:[#allocation2 + $0x10] sm:$0xf0] %v53
  %57 = vst.msk [vmem:[#allocation2 + $0x18] sm:$0xf0] %vm30, %v51
  %v58 = vld [vmem:[%s0] sm:$0xff]
  %v60 = vcombine.high %v58, %v58
  %61 = vrot.lane.b32.xlu0 %v58, 111
  %v62 = vpop.permute.xlu0 %61
  %63 = vrot.lane.b32.xlu0 %v60, 111
  %v64 = vpop.permute.xlu0 %63
  %vm65 = vcmask 908288
  %v66 = vsel %vm65, %v62, %v64
  %69 = vst [vmem:[#allocation2 + $0x20] sm:$0xf] %v66
  %70 = vst.msk [vmem:[#allocation2 + $0x28] sm:$0xf] %vm16, %v64
  %v71 = vld [vmem:[%s0] sm:$0xff]
  %v73 = vcombine.low %v71, %v71
  %74 = vrot.lane.b32.xlu0 %v73, 110
  %v75 = vpop.permute.xlu0 %74
  %76 = vrot.lane.b32.xlu0 %v71, 110
  %v77 = vpop.permute.xlu0 %76
  %vm78 = vcmask 900096
  %v79 = vsel %vm78, %v75, %v77
  %82 = vst [vmem:[#allocation2 + $0x20] sm:$0xf0] %v79
  %83 = vst.msk [vmem:[#allocation2 + $0x28] sm:$0xf0] %vm30, %v77
  %v84 = vld [vmem:[%s0] sm:$0xff]
  %v86 = vcombine.high %v84, %v84
  %87 = vrot.lane.b32.xlu0 %v84, 96
  %v88 = vpop.permute.xlu0 %87
  %89 = vrot.lane.b32.xlu0 %v86, 96
  %v90 = vpop.permute.xlu0 %89
  %vm91 = vcmask 785408
  %v92 = vsel %vm91, %v88, %v90
  %95 = vst [vmem:[#allocation2 + $0x30] sm:$0xf] %v92
  %96 = vst.msk [vmem:[#allocation2 + $0x38] sm:$0xf] %vm16, %v90
  %v97 = vld [vmem:[%s0] sm:$0xff]
  %v98 = vld [vmem:[%s0 + $0x8] sm:$0xf]
  %v101 = vcombine.low %v97, %v97
  %v102 = vcombine.low %v98, %v98
  %103 = vrot.lane.b32.xlu0 %v101, 95
  %v104 = vpop.permute.xlu0 %103
  %105 = vrot.lane.b32.xlu0 %v97, 95
  %v106 = vpop.permute.xlu0 %105
  %107 = vrot.lane.b32.xlu0 %v102, 95
  %v108 = vpop.permute.xlu0 %107
  %vm109 = vcmask 777216
  %v110 = vsel %vm109, %v104, %v106
  %v111 = vsel %vm109, %v106, %v108
  %114 = vst [vmem:[#allocation2 + $0x30] sm:$0xf0] %v110
  %115 = vst.msk [vmem:[#allocation2 + $0x38] sm:$0xf0] %vm30, %v111
  %v116 = vld [vmem:[%s0] sm:$0xff]
  %v117 = vld [vmem:[%s0 + $0x8] sm:$0xf]
  %v120 = vcombine.high %v116, %v116
  %121 = vrot.lane.b32.xlu0 %v116, 94
  %v122 = vpop.permute.xlu0 %121
  %123 = vrot.lane.b32.xlu0 %v120, 94
  %v124 = vpop.permute.xlu0 %123
  %125 = vrot.lane.b32.xlu0 %v117, 94
  %v126 = vpop.permute.xlu0 %125
  %vm127 = vcmask 769024
  %v128 = vsel %vm127, %v122, %v124
  %v129 = vsel %vm127, %v124, %v126
  %132 = vst [vmem:[#allocation2 + $0x40] sm:$0xf] %v128
  %133 = vst.msk [vmem:[#allocation2 + $0x48] sm:$0xf] %vm16, %v129
  %v134 = vld [vmem:[%s1] sm:$0xff]
  %v135 = vld [vmem:[#allocation2] sm:$0xff]
  %v136 = vld [vmem:[#allocation2 + $0x8] sm:$0xff]
  %v137 = vld [vmem:[#allocation2 + $0x10] sm:$0xff]
  %v138 = vld [vmem:[#allocation2 + $0x18] sm:$0xff]
  %v139 = vld [vmem:[#allocation2 + $0x20] sm:$0xff]
  %v140 = vld [vmem:[#allocation2 + $0x28] sm:$0xff]
  %v141 = vld [vmem:[#allocation2 + $0x30] sm:$0xff]
  %v142 = vld [vmem:[#allocation2 + $0x38] sm:$0xff]
  %v143 = vld [vmem:[#allocation2 + $0x40] sm:$0xf]
  %v144 = vld [vmem:[#allocation2 + $0x48] sm:$0xf]
  %vm145 = vcmask 293888
  %v147 = vsel %vm145, %v134, 0
  %vm149 = vcmask 1043456
  %v151 = vsel %vm149, %v143, 0
  %v154 = vsel %vm149, %v144, 0
  %156 = vmatprep.subr.mxu0 %v136
  %157 = vmatpush1.msra.mxu0 %v135
  %158 = vmatprep.subr.mxu0 %v138
  %159 = vmatpush1.msra.mxu0 %v137
  %160 = vmatprep.subr.mxu0 %v140
  %161 = vmatpush1.msra.mxu0 %v139
  %162 = vmatprep.subr.mxu0 %v142
  %163 = vmatpush1.msra.mxu0 %v141
  %164 = vmatprep.subr.mxu0 %v154
  %165 = vmatpush1.msra.mxu0 %v151
  %166 = vmatprep.subr.mxu0 0.0
  %167 = vmatpush1.msra.mxu0 0.0
  %168 = vmatprep.subr.mxu0 0.0
  %169 = vmatpush1.msra.mxu0 0.0
  %170 = vmatprep.subr.mxu0 0.0
  %171 = vmatpush1.msra.mxu0 0.0
  %172 = vmatprep.subr.mxu0 0.0
  %173 = vmatpush1.msra.mxu0 0.0
  %174 = vmatprep.subr.mxu0 0.0
  %175 = vmatpush1.msra.mxu0 0.0
  %176 = vmatprep.subr.mxu0 0.0
  %177 = vmatpush1.msra.mxu0 0.0
  %178 = vmatprep.subr.mxu0 0.0
  %179 = vmatpush1.msra.mxu0 0.0
  %180 = vmatprep.subr.mxu0 0.0
  %181 = vmatpush1.msra.mxu0 0.0
  %182 = vmatprep.subr.mxu0 0.0
  %183 = vmatpush1.msra.mxu0 0.0
  %184 = vmatprep.subr.mxu0 0.0
  %185 = vmatpush1.msra.mxu0 0.0
  %186 = vmatprep.subr.mxu0 0.0
  %187 = vmatpush1.msra.mxu0 0.0
  %188 = vmatprep.subr.mxu0 0.0
  %189 = vmatpush1.msra.mxu0 0.0
  %190 = vmatprep.subr.mxu0 0.0
  %191 = vmatpush1.msra.mxu0 0.0
  %192 = vmatprep.subr.mxu0 0.0
  %193 = vmatpush1.msra.mxu0 0.0
  %194 = vmatprep.subr.mxu0 0.0
  %195 = vmatpush1.msra.mxu0 0.0
  %196 = vmatprep.subr.mxu0 0.0
  %197 = vmatpush1.msra.mxu0 0.0
  %198 = vmatprep.subr.mxu0 0.0
  %199 = vmatpush1.msra.mxu0 0.0
  %200 = vmatprep.subr.mxu0 0.0
  %201 = vmatpush1.msra.mxu0 0.0
  %202 = vmatprep.subr.mxu0 0.0
  %203 = vmatpush1.msra.mxu0 0.0
  %204 = vmatprep.subr.mxu0 0.0
  %205 = vmatpush1.msra.mxu0 0.0
  %206 = vmatprep.subr.mxu0 0.0
  %207 = vmatpush1.msra.mxu0 0.0
  %208 = vmatprep.subr.mxu0 0.0
  %209 = vmatpush1.msra.mxu0 0.0
  %210 = vmatprep.subr.mxu0 0.0
  %211 = vmatpush1.msra.mxu0 0.0
  %212 = vmatprep.subr.mxu0 0.0
  %213 = vmatpush1.msra.mxu0 0.0
  %214 = vmatprep.subr.mxu0 0.0
  %215 = vmatpush1.msra.mxu0 0.0
  %216 = vmatprep.subr.mxu0 0.0
  %217 = vmatpush1.msra.mxu0 0.0
  %218 = vmatprep.subr.mxu0 0.0
  %219 = vmatpush1.msra.mxu0 0.0
  %220 = vmatprep.mubr.f32.mxu0 0.0
  %221 = vmatmul.mubr.f32.gmra.mrb[0].mxu0 %v147
  %v222 = vpop.f32.mrb[0].mxu0
  %v223 = vadd.f32 0.0, %v222
  %v224 = vpop.f32.mrb[0].mxu0
  %v225 = vadd.f32 0.0, %v224
  %226 = vdwg.mxu0
  %227 = vst [vmem:[%s2] sm:$0xff] %v223
  %228 = vst.msk [vmem:[%s2 + $0x8] sm:$0xff] %vm91, %v225
  // Predicated region
  $region10: #{connect_net_forward.1} parent=0 // pred_check
    _
  $region11: #{connect_net_forward.1} parent=0 // pred_check_branch
    %230 = sbr.rel (0) target = $region13
  $region12: #{connect_net_forward.1} parent=0 // pred_region
    _
  $region13: #{connect_net_forward.1} parent=0 // pred_fallthru
    _
  // Predicated region
  $region14: #{connect_net_forward.1} parent=0 // pred_check
    _
  $region15: #{connect_net_forward.1} parent=0 // pred_check_branch
    %232 = sbr.rel (0) target = $region17
  $region16: #{connect_net_forward.1} parent=0 // pred_region
    _
  $region17: #{connect_net_forward.1} parent=0 // pred_fallthru
    _

</llo_original>
